<compile_context>
chip_gen: v7x
topology: tpu7x:2x2x1
jax: 0.10.0
libtpu: 0.0.40
codegen_flags: <defaults>
</compile_context>

<pallas_src>
import functools

import jax
import jax.numpy as jnp
from jax import lax
from jax.experimental import pallas as pl
from jax.experimental.pallas import tpu as pltpu


def _round_up(x, m):
    return ((x + m - 1) // m) * m


def _l1_gather_kernel(ind_ref, mask_ref, target_ref, feat_ref, out_ref, acc_ref,
                      *, precision):
    # ind_ref   : VMEM (1, 1, Kp) int32    -- spatial indices (sentinel = 2**30 for pad)
    # mask_ref  : VMEM (1, 1, Kp) float32  -- 0/1 object mask (0 for pad)
    # target_ref: VMEM (1, C, Kp) float32  -- target, channels-major (0 for pad)
    # feat_ref  : VMEM (1, C, T)  native   -- one HW tile of the NCHW feature map
    # out_ref   : VMEM (1, 1, 1)  float32  -- per-batch sum of mask*|pred-target|
    # acc_ref   : VMEM (C, Kp)    float32  -- gathered-prediction accumulator
    t = pl.program_id(1)
    n_t = pl.num_programs(1)
    T = feat_ref.shape[-1]

    @pl.when(t == 0)
    def _init():
        acc_ref[...] = jnp.zeros_like(acc_ref)

    # (T,1) iota broadcast against (1,Kp) indices -> (T,Kp) 0/1 one-hot in feat dtype.
    pos = t * T + lax.broadcasted_iota(jnp.int32, (T, 1), 0)
    onehot = (pos == ind_ref[0]).astype(feat_ref.dtype)

    # Gather-by-matmul on the MXU: (C, T) @ (T, Kp) -> (C, Kp).
    # precision=HIGHEST for f32 features keeps the gather exact; bf16 is exact by itself.
    acc_ref[...] += jnp.dot(feat_ref[0], onehot,
                            preferred_element_type=jnp.float32,
                            precision=precision)

    @pl.when(t == n_t - 1)
    def _finalize():
        pred = acc_ref[...]                                              # (C, Kp)
        diff = mask_ref[0] * jnp.abs(pred - target_ref[0].astype(jnp.float32))
        out_ref[...] = jnp.broadcast_to(jnp.sum(diff), (1, 1, 1))


def l1_loss(output, mask, ind, target):
    """output: (B, C, H, W) NCHW; mask: (B, K); ind: (B, K) int; target: (B, K, C)."""
    B, C, H, W = output.shape
    K = target.shape[1]
    HW = H * W

    # Stream the big map in its native dtype (bf16 stays bf16); free reshape, no transpose.
    feat_dtype = output.dtype
    if feat_dtype not in (jnp.dtype(jnp.bfloat16), jnp.dtype(jnp.float32)):
        feat_dtype = jnp.dtype(jnp.float32)
    feat = output.reshape(B, C, HW).astype(feat_dtype)
    itemsize = jnp.dtype(feat_dtype).itemsize

    # Lane-pad K; sentinel index (never matches any position) -> all-zero one-hot column.
    Kp = _round_up(K, 128)
    ind_p = jnp.full((B, 1, Kp), 2 ** 30, jnp.int32)
    ind_p = ind_p.at[:, 0, :K].set(ind.astype(jnp.int32))
    mask_p = jnp.zeros((B, 1, Kp), jnp.float32)
    mask_p = mask_p.at[:, 0, :K].set(mask.astype(jnp.float32))
    tgt_p = jnp.zeros((B, C, Kp), jnp.float32)
    tgt_p = tgt_p.at[:, :, :K].set(jnp.transpose(target, (0, 2, 1)).astype(jnp.float32))

    # HW tile: aim for ~1 MiB of streamed feature data per grid step, budgeted so the
    # per-step VMEM working set stays well under v7x's 64 MiB (we set a 32 MiB limit).
    hw128 = _round_up(HW, 128)
    T = min(hw128, _round_up(max(128, (1 << 20) // max(1, C * itemsize)), 128))

    def _step_bytes(t):
        # double-buffered feature tile + one-hot spill + acc/target/out (f32)
        return 2 * C * t * itemsize + t * Kp * itemsize + 4 * C * Kp * 4

    while T > 128 and _step_bytes(T) > (12 << 20):
        T -= 128
    while T > 128 and hw128 % T != 0:      # prefer a T that divides the aligned extent
        T -= 128
    HWp = _round_up(hw128, T)
    if HWp > HW:                            # zero-pad: padded columns never selected (ind < HW)
        feat = jnp.pad(feat, ((0, 0), (0, 0), (0, HWp - HW)))

    precision = (lax.Precision.HIGHEST
                 if jnp.dtype(feat_dtype) == jnp.dtype(jnp.float32)
                 else lax.Precision.DEFAULT)

    # Note: with B == 1 one v7x TensorCore idles; B is the megacore-parallel axis.
    grid = (B, HWp // T)
    per_batch = pl.pallas_call(
        functools.partial(_l1_gather_kernel, precision=precision),
        out_shape=jax.ShapeDtypeStruct((B, 1, 1), jnp.float32),
        grid_spec=pltpu.PrefetchScalarGridSpec(
            num_scalar_prefetch=0,
            grid=grid,
            in_specs=[
                pl.BlockSpec((1, 1, Kp), lambda b, t: (b, 0, 0)),   # ind
                pl.BlockSpec((1, 1, Kp), lambda b, t: (b, 0, 0)),   # mask
                pl.BlockSpec((1, C, Kp), lambda b, t: (b, 0, 0)),   # target (channels-major)
                pl.BlockSpec((1, C, T), lambda b, t: (b, 0, t)),    # feature-map HW tile
            ],
            out_specs=pl.BlockSpec((1, 1, 1), lambda b, t: (b, 0, 0)),
            scratch_shapes=[pltpu.VMEM((C, Kp), jnp.float32)],
        ),
        compiler_params=pltpu.CompilerParams(
            dimension_semantics=("parallel", "arbitrary"),
            vmem_limit_bytes=32 * 1024 * 1024,
        ),
    )(ind_p, mask_p, tgt_p, feat)

    # F.l1_loss(..., reduction='mean') divides by the ORIGINAL B*K*C element count.
    return jnp.sum(per_batch) / (B * K * C)


if __name__ == "__main__":
    key = jax.random.PRNGKey(0)
    B, C, H, W, K = 2, 4, 16, 16, 8
    k1, k2, k3, k4 = jax.random.split(key, 4)
    output = jax.random.normal(k1, (B, C, H, W), jnp.float32)
    target = jax.random.normal(k2, (B, K, C), jnp.float32)
    ind = jax.random.randint(k3, (B, K), 0, H * W, jnp.int32)
    mask = (jax.random.uniform(k4, (B, K)) > 0.3).astype(jnp.float32)

    loss = jax.block_until_ready(l1_loss(output, mask, ind, target))

    # Plain-JAX reference (same semantics as the PyTorch module).
    feat = jnp.transpose(output, (0, 2, 3, 1)).reshape(B, H * W, C)
    pred = jnp.take_along_axis(feat, ind[..., None].astype(jnp.int32), axis=1)
    m = mask[..., None]
    ref = jnp.mean(jnp.abs(pred * m - target * m))
    assert jnp.allclose(loss, ref, atol=1e-6, rtol=1e-5), (loss, ref)
    print("KERNEL_OK")
</pallas_src>

<mosaic_0001>
module attributes {stable_mosaic.version = 11 : i64} {
  func.func @_l1_gather_kernel(%arg0: i32, %arg1: i32, %arg2: memref<1x1x128xi32, #tpu.memory_space<vmem>>, %arg3: memref<1x1x128xf32, #tpu.memory_space<vmem>>, %arg4: memref<1x4x128xf32, #tpu.memory_space<vmem>>, %arg5: memref<1x4x256xf32, #tpu.memory_space<vmem>>, %arg6: memref<1x1x1xf32, #tpu.memory_space<vmem>>, %arg7: memref<4x128xf32, #tpu.memory_space<vmem>>) attributes {dimension_semantics = [#tpu.dimension_semantics<parallel>, #tpu.dimension_semantics<arbitrary>], iteration_bounds = array<i64: 2, 1>, scalar_prefetch = 0 : i64, scratch_operands = 1 : i64, tpu.core_type = #tpu.core_type<tc>, window_params = [{transform_indices = @transform_0, window_bounds = array<i64: 1, 1, 128>}, {transform_indices = @transform_1, window_bounds = array<i64: 1, 1, 128>}, {transform_indices = @transform_2, window_bounds = array<i64: 1, 4, 128>}, {transform_indices = @transform_3, window_bounds = array<i64: 1, 4, 256>}, {transform_indices = @transform_4, window_bounds = array<i64: 1, 1, 1>}]} {
    %c0_i32 = arith.constant 0 : i32
    %0 = arith.cmpi eq, %arg1, %c0_i32 : i32
    %1 = arith.extui %0 : i1 to i32
    %c0_i32_0 = arith.constant 0 : i32
    %2 = arith.cmpi ne, %1, %c0_i32_0 : i32
    scf.if %2 {
      %cst_12 = arith.constant 0.000000e+00 : f32
      %23 = vector.broadcast %cst_12 : f32 to vector<4x128xf32>
      %c0_13 = arith.constant 0 : index
      %c0_14 = arith.constant 0 : index
      %24 = vector.load %arg7[%c0_13, %c0_14] : memref<4x128xf32, #tpu.memory_space<vmem>>, vector<4x128xf32>
      tpu.vector_store %arg7[%c0_13, %c0_14], %23 {strides = array<i32>} : memref<4x128xf32, #tpu.memory_space<vmem>>, vector<4x128xf32>,
    } else {
    }
    %c256_i32 = arith.constant 256 : i32
    %3 = arith.muli %arg1, %c256_i32 : i32
    %4 = tpu.iota {dimensions = array<i32: 0>} : vector<256x1xi32>
    %5 = vector.broadcast %3 : i32 to vector<256x1xi32>
    %6 = arith.addi %5, %4 : vector<256x1xi32>
    %c0 = arith.constant 0 : index
    %c0_1 = arith.constant 0 : index
    %c0_2 = arith.constant 0 : index
    %7 = vector.load %arg2[%c0, %c0_1, %c0_2] : memref<1x1x128xi32, #tpu.memory_space<vmem>>, vector<1x1x128xi32>
    %8 = vector.shape_cast %7 : vector<1x1x128xi32> to vector<1x128xi32>
    %9 = vector.broadcast %6 : vector<256x1xi32> to vector<256x128xi32>
    %10 = vector.broadcast %8 : vector<1x128xi32> to vector<256x128xi32>
    %11 = arith.cmpi eq, %9, %10 : vector<256x128xi32>
    %12 = arith.extui %11 : vector<256x128xi1> to vector<256x128xi32>
    %13 = arith.sitofp %12 : vector<256x128xi32> to vector<256x128xf32>
    %c0_3 = arith.constant 0 : index
    %c0_4 = arith.constant 0 : index
    %14 = vector.load %arg7[%c0_3, %c0_4] : memref<4x128xf32, #tpu.memory_space<vmem>>, vector<4x128xf32>
    %c0_5 = arith.constant 0 : index
    %c0_6 = arith.constant 0 : index
    %c0_7 = arith.constant 0 : index
    %15 = vector.load %arg5[%c0_5, %c0_6, %c0_7] : memref<1x4x256xf32, #tpu.memory_space<vmem>>, vector<1x4x256xf32>
    %16 = vector.shape_cast %15 : vector<1x4x256xf32> to vector<4x256xf32>
    %cst = arith.constant dense<0.000000e+00> : vector<4x128xf32>
    %17 = tpu.matmul %16, %13, %cst {dimension_numbers = #tpu.dot_dimension_numbers<[1], [0], [0], [1], [0, 0, 1, 1], [], []>, precision = #tpu.contract_precision<fp32>} : vector<4x256xf32>, vector<256x128xf32>, vector<4x128xf32> -> vector<4x128xf32>
    %18 = arith.addf %14, %17 : vector<4x128xf32>
    %c0_8 = arith.constant 0 : index
    %c0_9 = arith.constant 0 : index
    %19 = vector.load %arg7[%c0_8, %c0_9] : memref<4x128xf32, #tpu.memory_space<vmem>>, vector<4x128xf32>
    tpu.vector_store %arg7[%c0_8, %c0_9], %18 {strides = array<i32>} : memref<4x128xf32, #tpu.memory_space<vmem>>, vector<4x128xf32>,
    %c0_i32_10 = arith.constant 0 : i32
    %20 = arith.cmpi eq, %arg1, %c0_i32_10 : i32
    %21 = arith.extui %20 : i1 to i32
    %c0_i32_11 = arith.constant 0 : i32
    %22 = arith.cmpi ne, %21, %c0_i32_11 : i32
    scf.if %22 {
      %c0_12 = arith.constant 0 : index
      %c0_13 = arith.constant 0 : index
      %23 = vector.load %arg7[%c0_12, %c0_13] : memref<4x128xf32, #tpu.memory_space<vmem>>, vector<4x128xf32>
      %c0_14 = arith.constant 0 : index
      %c0_15 = arith.constant 0 : index
      %c0_16 = arith.constant 0 : index
      %24 = vector.load %arg3[%c0_14, %c0_15, %c0_16] : memref<1x1x128xf32, #tpu.memory_space<vmem>>, vector<1x1x128xf32>
      %25 = vector.shape_cast %24 : vector<1x1x128xf32> to vector<1x128xf32>
      %c0_17 = arith.constant 0 : index
      %c0_18 = arith.constant 0 : index
      %c0_19 = arith.constant 0 : index
      %26 = vector.load %arg4[%c0_17, %c0_18, %c0_19] : memref<1x4x128xf32, #tpu.memory_space<vmem>>, vector<1x4x128xf32>
      %27 = vector.shape_cast %26 : vector<1x4x128xf32> to vector<4x128xf32>
      %28 = arith.subf %23, %27 : vector<4x128xf32>
      %29 = math.absf %28 : vector<4x128xf32>
      %30 = vector.broadcast %25 : vector<1x128xf32> to vector<4x128xf32>
      %31 = arith.mulf %30, %29 : vector<4x128xf32>
      %32 = vector.shape_cast %31 : vector<4x128xf32> to vector<1x4x128xf32>
      %cst_20 = arith.constant dense<0.000000e+00> : vector<1xf32>
      %33 = vector.multi_reduction <add>, %32, %cst_20 [1, 2] : vector<1x4x128xf32> to vector<1xf32>
      %34 = vector.shape_cast %33 : vector<1xf32> to vector<1x1x1xf32>
      %35 = vector.extract %34[0, 0, 0] : f32 from vector<1x1x1xf32>
      %36 = vector.broadcast %35 : f32 to vector<1x1x1xf32>
      %c0_21 = arith.constant 0 : index
      %c0_22 = arith.constant 0 : index
      %c0_23 = arith.constant 0 : index
      %37 = vector.load %arg6[%c0_21, %c0_22, %c0_23] : memref<1x1x1xf32, #tpu.memory_space<vmem>>, vector<1x1x1xf32>
      tpu.vector_store %arg6[%c0_21, %c0_22, %c0_23], %36 {strides = array<i32>} : memref<1x1x1xf32, #tpu.memory_space<vmem>>, vector<1x1x1xf32>,
    } else {
    }
    return
  }
  func.func @transform_0(%arg0: i32, %arg1: i32) -> (i32, i32, i32) {
    %c0_i32 = arith.constant 0 : i32
    %c0_i32_0 = arith.constant 0 : i32
    %c0_i32_1 = arith.constant 0 : i32
    return %arg0, %c0_i32, %c0_i32_0 : i32, i32, i32
  }
  func.func @transform_1(%arg0: i32, %arg1: i32) -> (i32, i32, i32) {
    %c0_i32 = arith.constant 0 : i32
    %c0_i32_0 = arith.constant 0 : i32
    %c0_i32_1 = arith.constant 0 : i32
    return %arg0, %c0_i32, %c0_i32_0 : i32, i32, i32
  }
  func.func @transform_2(%arg0: i32, %arg1: i32) -> (i32, i32, i32) {
    %c0_i32 = arith.constant 0 : i32
    %c0_i32_0 = arith.constant 0 : i32
    %c0_i32_1 = arith.constant 0 : i32
    return %arg0, %c0_i32, %c0_i32_0 : i32, i32, i32
  }
  func.func @transform_3(%arg0: i32, %arg1: i32) -> (i32, i32, i32) {
    %c0_i32 = arith.constant 0 : i32
    %c0_i32_0 = arith.constant 0 : i32
    return %arg0, %c0_i32, %arg1 : i32, i32, i32
  }
  func.func @transform_4(%arg0: i32, %arg1: i32) -> (i32, i32, i32) {
    %c0_i32 = arith.constant 0 : i32
    %c0_i32_0 = arith.constant 0 : i32
    %c0_i32_1 = arith.constant 0 : i32
    return %arg0, %c0_i32, %c0_i32_0 : i32, i32, i32
  }
}

</mosaic_0001>

<llo_original>
// kernel: tpu_custom_call.1
$region0: #{tpu_custom_call.1}
  #allocation0 [shape = 'u32[]', space=smem, size = 0x4, offset = 0x4, fixed_abs, tag = 'smem constant byte address 0x4 - core index']
  #allocation1 [shape = 'u32[144,128]{1,0:T(1,128)}', space=vmem, size = 0x12000, scoped, tag = 'internal scratch']
  #allocation2 [shape = 'f32[4,128]{1,0:T(4,128)}', space=vmem, size = 0x800, scoped, tag = 'scratch operand']
  %s0 = inlined_call_operand.hbm [shape: s32[2,1,128], index: 0, kind: input, shape index: {}]
  %s1 = inlined_call_operand.vmem [shape: f32[2,1,128], index: 1, kind: input, shape index: {}]
  %s2 = inlined_call_operand.hbm [shape: f32[2,4,128], index: 2, kind: input, shape index: {}]
  %s3 = inlined_call_operand.hbm [shape: f32[2,4,256], index: 3, kind: input, shape index: {}]
  %s4 = inlined_call_operand.vmem [shape: f32[2,1,1], index: 4, kind: output, shape index: {}]
  %s5 = sld [smem:[#allocation0]]
  $region69: #{tpu_custom_call.1} parent=0
    _
  %s7 = ssub.s32 1, %s5
  %s8 = scalar_select 0, %s7, %s5
  $region1: #{tpu_custom_call.1} parent=0
    #allocation3 [shape = 'u8[1024]{0}', space=vmem, size = 0x400, scoped, tag = 'input window, operand 0']
    #allocation4 [shape = 's32[2]{0}', space=sflag, size = 0x8, scoped, tag = 'scoped memory for tpu_custom_call.1']
    #allocation5 [shape = 'u8[4096]{0}', space=vmem, size = 0x1000, scoped, tag = 'input window, operand 2']
    #allocation6 [shape = 's32[2]{0}', space=sflag, size = 0x8, scoped, tag = 'scoped memory for tpu_custom_call.1']
    #allocation7 [shape = 'u8[8192]{0}', space=vmem, size = 0x2000, scoped, tag = 'input window, operand 3']
    %9 = vsyncpa [#allocation4], 0
    %s10 = scalar_lea.sflag [#allocation4], 1
    %11 = vsyncpa %s10, 0
    %12 = vsyncpa [#allocation6], 0
    %s13 = scalar_lea.sflag [#allocation6], 1
    %14 = vsyncpa %s13, 0
    loop: start=0, step=1, limit=4
    $region2: #{tpu_custom_call.1} parent=1 // loop_pre_header
      _
    $region3: #{tpu_custom_call.1} parent=1 // loop_header
      %s16 = sphi 0, %s20
      %p17 = scmp.ge.s32.totalorder %s16, 4
      %s23 = sphi 0, %s35
      %s24 = sphi 0, %s31
      %s25 = sphi 0, %s23
      %s26 = sphi 0, %s24
      %s27 = sphi 0, %s25
      %s28 = sphi 0, %s26
      %s38 = sphi 0, %s40
      %s41 = sphi 0, %s38
      %s42 = sphi 0, %s41
      %s58 = sphi 0, %s42
      %s64 = sphi 0, %s66
      %s67 = sphi 0, %s64
      %s68 = sphi 0, %s67
      %s84 = sphi 0, %s68
      %s90 = sphi 0, %s92
      %s93 = sphi 0, %s90
      %s94 = sphi 0, %s93
      %s110 = sphi 0, %s94
      %s118 = sphi 0, %s120
      %s121 = sphi 0, %s118
      %s122 = sphi 0, %s121
      %s138 = sphi 0, %s122
      %s144 = sphi 0, %s146
      %s147 = sphi 0, %s144
      %s148 = sphi 0, %s147
      %s164 = sphi 0, %s148
    $region4: #{tpu_custom_call.1} parent=1 // loop_header_branch
      %19 = sbr.rel (%p17) target = $region8
    $region5: #{tpu_custom_call.1} parent=1 // loop_body
      %s21 = ssub.s32 %s16, 1
      %s22 = ssub.s32 %s16, 2
      %s29 = sadd.s32 1, %s24
      %p30 = scmp.ge.s32.totalorder %s29, 1
      %s31 = scalar_select %p30, 0, %s29
      %s32 = sadd.s32 1, %s23
      %s33 = scalar_select %p30, %s32, %s23
      %p34 = scmp.ge.s32.totalorder %s33, 2
      %s35 = scalar_select %p34, 0, %s33
      %s36 = ssub.s32 %s23, %s35
      %p37 = scmp.eq.s32.totalorder %s36, 0
      %s39 = sadd.s32 %s38, 1
      %s40 = scalar_select %p37, %s38, %s39
      %p43 = pneg %p37
      %p44 = scmp.eq.s32.totalorder %s16, 1
      %p45 = por %p43, %p44
      %p46 = scmp.ne.s32.totalorder %s38, %s41
      %p47 = scmp.eq.s32.totalorder %s16, 0
      %p48 = por %p46, %p47
      %p49 = scmp.ne.s32.totalorder %s38, %s41
      %p50 = scmp.eq.s32.totalorder %s21, 1
      %p51 = por %p49, %p50
      %p52 = scmp.ne.s32.totalorder %s41, %s42
      %p53 = scmp.eq.s32.totalorder %s21, 0
      %p54 = por %p52, %p53
      %p55 = scmp.ne.s32.totalorder %s41, %s42
      %p56 = scmp.eq.s32.totalorder %s22, 1
      %p57 = por %p55, %p56
      %p59 = scmp.ne.s32.totalorder %s42, %s58
      %p60 = scmp.eq.s32.totalorder %s22, 0
      %p61 = por %p59, %p60
      %s62 = ssub.s32 %s23, %s35
      %p63 = scmp.eq.s32.totalorder %s62, 0
      %s65 = sadd.s32 %s64, 1
      %s66 = scalar_select %p63, %s64, %s65
      %p69 = pneg %p63
      %p70 = scmp.eq.s32.totalorder %s16, 1
      %p71 = por %p69, %p70
      %p72 = scmp.ne.s32.totalorder %s64, %s67
      %p73 = scmp.eq.s32.totalorder %s16, 0
      %p74 = por %p72, %p73
      %p75 = scmp.ne.s32.totalorder %s64, %s67
      %p76 = scmp.eq.s32.totalorder %s21, 1
      %p77 = por %p75, %p76
      %p78 = scmp.ne.s32.totalorder %s67, %s68
      %p79 = scmp.eq.s32.totalorder %s21, 0
      %p80 = por %p78, %p79
      %p81 = scmp.ne.s32.totalorder %s67, %s68
      %p82 = scmp.eq.s32.totalorder %s22, 1
      %p83 = por %p81, %p82
      %p85 = scmp.ne.s32.totalorder %s68, %s84
      %p86 = scmp.eq.s32.totalorder %s22, 0
      %p87 = por %p85, %p86
      %s88 = ssub.s32 %s23, %s35
      %p89 = scmp.eq.s32.totalorder %s88, 0
      %s91 = sadd.s32 %s90, 1
      %s92 = scalar_select %p89, %s90, %s91
      %p95 = pneg %p89
      %p96 = scmp.eq.s32.totalorder %s16, 1
      %p97 = por %p95, %p96
      %p98 = scmp.ne.s32.totalorder %s90, %s93
      %p99 = scmp.eq.s32.totalorder %s16, 0
      %p100 = por %p98, %p99
      %p101 = scmp.ne.s32.totalorder %s90, %s93
      %p102 = scmp.eq.s32.totalorder %s21, 1
      %p103 = por %p101, %p102
      %p104 = scmp.ne.s32.totalorder %s93, %s94
      %p105 = scmp.eq.s32.totalorder %s21, 0
      %p106 = por %p104, %p105
      %p107 = scmp.ne.s32.totalorder %s93, %s94
      %p108 = scmp.eq.s32.totalorder %s22, 1
      %p109 = por %p107, %p108
      %p111 = scmp.ne.s32.totalorder %s94, %s110
      %p112 = scmp.eq.s32.totalorder %s22, 0
      %p113 = por %p111, %p112
      %s114 = ssub.s32 %s23, %s35
      %s115 = ssub.s32 %s24, %s31
      %s116 = sor.u32 %s114, %s115
      %p117 = scmp.eq.s32.totalorder %s116, 0
      %s119 = sadd.s32 %s118, 1
      %s120 = scalar_select %p117, %s118, %s119
      %p123 = pneg %p117
      %p124 = scmp.eq.s32.totalorder %s16, 1
      %p125 = por %p123, %p124
      %p126 = scmp.ne.s32.totalorder %s118, %s121
      %p127 = scmp.eq.s32.totalorder %s16, 0
      %p128 = por %p126, %p127
      %p129 = scmp.ne.s32.totalorder %s118, %s121
      %p130 = scmp.eq.s32.totalorder %s21, 1
      %p131 = por %p129, %p130
      %p132 = scmp.ne.s32.totalorder %s121, %s122
      %p133 = scmp.eq.s32.totalorder %s21, 0
      %p134 = por %p132, %p133
      %p135 = scmp.ne.s32.totalorder %s121, %s122
      %p136 = scmp.eq.s32.totalorder %s22, 1
      %p137 = por %p135, %p136
      %p139 = scmp.ne.s32.totalorder %s122, %s138
      %p140 = scmp.eq.s32.totalorder %s22, 0
      %p141 = por %p139, %p140
      %s142 = ssub.s32 %s23, %s35
      %p143 = scmp.eq.s32.totalorder %s142, 0
      %s145 = sadd.s32 %s144, 1
      %s146 = scalar_select %p143, %s144, %s145
      %p149 = pneg %p143
      %p150 = scmp.eq.s32.totalorder %s16, 1
      %p151 = por %p149, %p150
      %p152 = scmp.ne.s32.totalorder %s144, %s147
      %p153 = scmp.eq.s32.totalorder %s16, 0
      %p154 = por %p152, %p153
      %p155 = scmp.ne.s32.totalorder %s144, %s147
      %p156 = scmp.eq.s32.totalorder %s21, 1
      %p157 = por %p155, %p156
      %p158 = scmp.ne.s32.totalorder %s147, %s148
      %p159 = scmp.eq.s32.totalorder %s21, 0
      %p160 = por %p158, %p159
      %p161 = scmp.ne.s32.totalorder %s147, %s148
      %p162 = scmp.eq.s32.totalorder %s22, 1
      %p163 = por %p161, %p162
      %p165 = scmp.ne.s32.totalorder %s148, %s164
      %p166 = scmp.eq.s32.totalorder %s22, 0
      %p167 = por %p165, %p166
      %p168 = scmp.le.s32.totalorder 1, %s16
      %p169 = scmp.lt.s32.totalorder %s16, 3
      %p170 = pnand %p168, %p169
      %p171 = pneg %p170
      // Predicated region
      $region9: #{tpu_custom_call.1} parent=5 // pred_check
        _
      $region10: #{tpu_custom_call.1} parent=5 // pred_check_branch
        %173 = sbr.rel (%p170) target = $region12
      $region11: #{tpu_custom_call.1} parent=5 // pred_region
        %s174 = ssub.s32 %s16, 1
      $region12: #{tpu_custom_call.1} parent=5 // pred_fallthru
        _
      %p175 = scmp.lt.s32.totalorder %s16, 2
      // Predicated region
      $region13: #{tpu_custom_call.1} parent=5 // pred_check
        %p176 = pneg %p175
      $region14: #{tpu_custom_call.1} parent=5 // pred_check_branch
        %178 = sbr.rel (%p176) target = $region16
      $region15: #{tpu_custom_call.1} parent=5 // pred_region
        // Predicated region
        $region17: #{tpu_custom_call.1} parent=15 // pred_check
          %p179 = pneg %p48
        $region18: #{tpu_custom_call.1} parent=15 // pred_check_branch
          %181 = sbr.rel (%p179) target = $region20
        $region19: #{tpu_custom_call.1} parent=15 // pred_region
          %s182 = sand.u32 %s38, 1
          %s183 = scalar_lea.sflag [#allocation4], %s182
          %s184 = sand.u32 %s38, 1
          %s185 = scalar_lea.vmem [#allocation3], %s184
          %s187 = ssub.s32 16, 16
          %188 = vsyncadd %s183, %s187
          %s189 = smul.addr %s23, 16
          %s190 = scalar_lea.hbm %s0, %s189
          %s192 = sshll.u32 %s185, 4
          %s193 = int_to_ptr.vmem [resolvable:$true] %s192
          %195 = dma.hbm_to_vmem [thread:$0]  %s190, 16, %s193, %s183
        $region20: #{tpu_custom_call.1} parent=15 // pred_fallthru
          _
        // Predicated region
        $region21: #{tpu_custom_call.1} parent=15 // pred_check
          %p196 = pneg %p74
        $region22: #{tpu_custom_call.1} parent=15 // pred_check_branch
          %198 = sbr.rel (%p196) target = $region24
        $region23: #{tpu_custom_call.1} parent=15 // pred_region
          %p199 = scmp.lt.s32.totalorder %s23, 1
          %s200 = scalar_select %p199, %s23, 1
          %s201 = scalar_lea.vmem %s1, %s200
        $region24: #{tpu_custom_call.1} parent=15 // pred_fallthru
          _
        // Predicated region
        $region25: #{tpu_custom_call.1} parent=15 // pred_check
          %p202 = pneg %p100
        $region26: #{tpu_custom_call.1} parent=15 // pred_check_branch
          %204 = sbr.rel (%p202) target = $region28
        $region27: #{tpu_custom_call.1} parent=15 // pred_region
          %s205 = sand.u32 %s16, 1
          %s206 = scalar_lea.sflag [#allocation6], %s205
          %s207 = sand.u32 %s90, 1
          %s208 = smul.addr %s207, 4
          %s209 = scalar_lea.vmem [#allocation5], %s208
          %s211 = ssub.s32 64, 64
          %212 = vsyncadd %s206, %s211
          %s213 = smul.addr %s23, 64
          %s214 = scalar_lea.hbm %s2, %s213
          %s216 = sshll.u32 %s209, 4
          %s217 = int_to_ptr.vmem [resolvable:$true] %s216
          %219 = dma.hbm_to_vmem [thread:$0]  %s214, 64, %s217, %s206
        $region28: #{tpu_custom_call.1} parent=15 // pred_fallthru
          _
        // Predicated region
        $region29: #{tpu_custom_call.1} parent=15 // pred_check
          %p220 = pneg %p128
        $region30: #{tpu_custom_call.1} parent=15 // pred_check_branch
          %222 = sbr.rel (%p220) target = $region32
        $region31: #{tpu_custom_call.1} parent=15 // pred_region
          %s223 = sand.u32 %s16, 1
          %s224 = scalar_lea.sflag [#allocation6], %s223
          %s225 = sand.u32 %s118, 1
          %s226 = smul.addr %s225, 8
          %s227 = scalar_lea.vmem [#allocation7], %s226
          %s228 = smul.u32 2, %s24
          %s230 = ssub.s32 128, 128
          %231 = vsyncadd %s224, %s230
          %s232 = smul.addr %s23, 2
          %s233 = sadd.s32 %s228, %s232
          %s234 = smul.addr %s233, 64
          %s235 = scalar_lea.hbm %s3, %s234
          %s237 = sshll.u32 %s227, 4
          %s238 = int_to_ptr.vmem [resolvable:$true] %s237
          %240 = dma.hbm_to_vmem [thread:$0]  %s235, 128, %s238, %s224
        $region32: #{tpu_custom_call.1} parent=15 // pred_fallthru
          _
      $region16: #{tpu_custom_call.1} parent=5 // pred_fallthru
        _
      %p241 = scmp.le.s32.totalorder 1, %s16
      %p242 = scmp.lt.s32.totalorder %s16, 3
      %p243 = pnand %p241, %p242
      %p244 = pneg %p243
      // Predicated region
      $region33: #{tpu_custom_call.1} parent=5 // pred_check
        _
      $region34: #{tpu_custom_call.1} parent=5 // pred_check_branch
        %246 = sbr.rel (%p243) target = $region36
      $region35: #{tpu_custom_call.1} parent=5 // pred_region
        %s247 = ssub.s32 %s16, 1
        %s248 = sand.u32 %s41, 1
        %s249 = scalar_lea.sflag [#allocation4], %s248
        %s250 = sand.u32 %s41, 1
        %s251 = scalar_lea.vmem [#allocation3], %s250
        // Predicated region
        $region37: #{tpu_custom_call.1} parent=35 // pred_check
          %p252 = pneg %p54
        $region38: #{tpu_custom_call.1} parent=35 // pred_check_branch
          %254 = sbr.rel (%p252) target = $region40
        $region39: #{tpu_custom_call.1} parent=35 // pred_region
          %255 = dma.done %s249, 16
        $region40: #{tpu_custom_call.1} parent=35 // pred_fallthru
          _
        %s256 = sand.u32 %s21, 1
        %s257 = scalar_lea.sflag [#allocation6], %s256
        %s258 = sand.u32 %s93, 1
        %s259 = smul.addr %s258, 4
        %s260 = scalar_lea.vmem [#allocation5], %s259
        // Predicated region
        $region41: #{tpu_custom_call.1} parent=35 // pred_check
          %p261 = pneg %p106
        $region42: #{tpu_custom_call.1} parent=35 // pred_check_branch
          %263 = sbr.rel (%p261) target = $region44
        $region43: #{tpu_custom_call.1} parent=35 // pred_region
          %264 = dma.done %s257, 64
        $region44: #{tpu_custom_call.1} parent=35 // pred_fallthru
          _
        %s265 = sand.u32 %s21, 1
        %s266 = scalar_lea.sflag [#allocation6], %s265
        %s267 = sand.u32 %s121, 1
        %s268 = smul.addr %s267, 8
        %s269 = scalar_lea.vmem [#allocation7], %s268
        // Predicated region
        $region45: #{tpu_custom_call.1} parent=35 // pred_check
          %p270 = pneg %p134
        $region46: #{tpu_custom_call.1} parent=35 // pred_check_branch
          %272 = sbr.rel (%p270) target = $region48
        $region47: #{tpu_custom_call.1} parent=35 // pred_region
          %273 = dma.done %s266, 128
        $region48: #{tpu_custom_call.1} parent=35 // pred_fallthru
          _
        %s274 = sand.u32 %s41, 1
        %s275 = scalar_lea.sflag [#allocation4], %s274
        %s276 = sand.u32 %s41, 1
        %s277 = scalar_lea.vmem [#allocation3], %s276
        %p278 = pneg %p54
        %p279 = pneg %p51
        %p280 = scmp.lt.s32.totalorder %s25, 1
        %s281 = scalar_select %p280, %s25, 1
        %s282 = scalar_lea.vmem %s1, %s281
        %p283 = pneg %p80
        %p284 = pneg %p77
        %s285 = sand.u32 %s21, 1
        %s286 = scalar_lea.sflag [#allocation6], %s285
        %s287 = sand.u32 %s93, 1
        %s288 = smul.addr %s287, 4
        %s289 = scalar_lea.vmem [#allocation5], %s288
        %p290 = pneg %p106
        %p291 = pneg %p103
        %s292 = sand.u32 %s21, 1
        %s293 = scalar_lea.sflag [#allocation6], %s292
        %s294 = sand.u32 %s121, 1
        %s295 = smul.addr %s294, 8
        %s296 = scalar_lea.vmem [#allocation7], %s295
        %p297 = pneg %p134
        %p298 = pneg %p131
        %p299 = pneg %p160
        %p300 = pneg %p157
        %p301 = scmp.lt.s32.totalorder %s25, 1
        %s302 = scalar_select %p301, %s25, 1
        %s303 = scalar_lea.vmem %s4, %s302
        %p304 = scmp.lt.s32.totalorder %s25, 1
        %s305 = scalar_select %p304, %s25, 1
        %s306 = scalar_lea.vmem %s1, %s305
        %s307 = smul.u32 2, %s26
        %p308 = scmp.lt.s32.totalorder %s25, 1
        %s309 = scalar_select %p308, %s25, 1
        %s310 = scalar_lea.vmem %s4, %s309
        %p311 = scmp.eq.s32.totalorder %s26, 0
        // Predicated region
        $region49: #{tpu_custom_call.1} parent=35 // pred_check
          %p312 = pneg %p311
        $region50: #{tpu_custom_call.1} parent=35 // pred_check_branch
          %314 = sbr.rel (%p312) target = $region52
        $region51: #{tpu_custom_call.1} parent=35 // pred_region
          %315 = vst [vmem:[#allocation2] sm:$0xf] 0.0
        $region52: #{tpu_custom_call.1} parent=35 // pred_fallthru
          _
        %s316 = smul.u32 %s26, 256
        %v317 = vlaneseq
        %v318 = vshrl.u32 %v317, 7
        %v319 = vadd.s32 %v318, 8
        %v320 = vadd.s32 %v318, 16
        %v321 = vadd.s32 %v318, 24
        %v322 = vadd.s32 %v318, 32
        %v323 = vadd.s32 %v318, 40
        %v324 = vadd.s32 %v318, 48
        %v325 = vadd.s32 %v318, 56
        %v326 = vadd.s32 %v318, 64
        %v327 = vadd.s32 %v318, 72
        %v328 = vadd.s32 %v318, 80
        %v329 = vadd.s32 %v318, 88
        %v330 = vadd.s32 %v318, 96
        %v331 = vadd.s32 %v318, 104
        %v332 = vadd.s32 %v318, 112
        %v333 = vadd.s32 %v318, 120
        %v334 = vadd.s32 %v318, 128
        %v335 = vadd.s32 %v318, 136
        %v336 = vadd.s32 %v318, 144
        %v337 = vadd.s32 %v318, 152
        %v338 = vadd.s32 %v318, 160
        %v339 = vadd.s32 %v318, 168
        %v340 = vadd.s32 %v318, 176
        %v341 = vadd.s32 %v318, 184
        %v342 = vadd.s32 %v318, 192
        %v343 = vadd.s32 %v318, 200
        %v344 = vadd.s32 %v318, 208
        %v345 = vadd.s32 %v318, 216
        %v346 = vadd.s32 %v318, 224
        %v347 = vadd.s32 %v318, 232
        %v348 = vadd.s32 %v318, 240
        %v349 = vadd.s32 %v318, 248
        %v350 = vstv %s316
        %v351 = vadd.s32 %v350, %v318
        %v352 = vadd.s32 %v350, %v319
        %v353 = vadd.s32 %v350, %v320
        %v354 = vadd.s32 %v350, %v321
        %v355 = vadd.s32 %v350, %v322
        %v356 = vadd.s32 %v350, %v323
        %v357 = vadd.s32 %v350, %v324
        %v358 = vadd.s32 %v350, %v325
        %v359 = vadd.s32 %v350, %v326
        %v360 = vadd.s32 %v350, %v327
        %v361 = vadd.s32 %v350, %v328
        %v362 = vadd.s32 %v350, %v329
        %v363 = vadd.s32 %v350, %v330
        %v364 = vadd.s32 %v350, %v331
        %v365 = vadd.s32 %v350, %v332
        %v366 = vadd.s32 %v350, %v333
        %v367 = vadd.s32 %v350, %v334
        %v368 = vadd.s32 %v350, %v335
        %v369 = vadd.s32 %v350, %v336
        %v370 = vadd.s32 %v350, %v337
        %v371 = vadd.s32 %v350, %v338
        %v372 = vadd.s32 %v350, %v339
        %v373 = vadd.s32 %v350, %v340
        %v374 = vadd.s32 %v350, %v341
        %v375 = vadd.s32 %v350, %v342
        %v376 = vadd.s32 %v350, %v343
        %v377 = vadd.s32 %v350, %v344
        %v378 = vadd.s32 %v350, %v345
        %v379 = vadd.s32 %v350, %v346
        %v380 = vadd.s32 %v350, %v347
        %v381 = vadd.s32 %v350, %v348
        %v382 = vadd.s32 %v350, %v349
        %v383 = vld [vmem:[%s251] sm:$0x1]
        %v384 = vlaneseq
        %v385 = vshrl.u32 %v384, 7
        %v386 = vsub.s32 0, %v385
        %v387 = vrot.slane %v383, %v386
        %vm388 = vcmp.eq.s32.totalorder %v351, %v387
        %vm389 = vcmp.eq.s32.totalorder %v352, %v387
        %vm390 = vcmp.eq.s32.totalorder %v353, %v387
        %vm391 = vcmp.eq.s32.totalorder %v354, %v387
        %vm392 = vcmp.eq.s32.totalorder %v355, %v387
        %vm393 = vcmp.eq.s32.totalorder %v356, %v387
        %vm394 = vcmp.eq.s32.totalorder %v357, %v387
        %vm395 = vcmp.eq.s32.totalorder %v358, %v387
        %vm396 = vcmp.eq.s32.totalorder %v359, %v387
        %vm397 = vcmp.eq.s32.totalorder %v360, %v387
        %vm398 = vcmp.eq.s32.totalorder %v361, %v387
        %vm399 = vcmp.eq.s32.totalorder %v362, %v387
        %vm400 = vcmp.eq.s32.totalorder %v363, %v387
        %vm401 = vcmp.eq.s32.totalorder %v364, %v387
        %vm402 = vcmp.eq.s32.totalorder %v365, %v387
        %vm403 = vcmp.eq.s32.totalorder %v366, %v387
        %vm404 = vcmp.eq.s32.totalorder %v367, %v387
        %vm405 = vcmp.eq.s32.totalorder %v368, %v387
        %vm406 = vcmp.eq.s32.totalorder %v369, %v387
        %vm407 = vcmp.eq.s32.totalorder %v370, %v387
        %vm408 = vcmp.eq.s32.totalorder %v371, %v387
        %vm409 = vcmp.eq.s32.totalorder %v372, %v387
        %vm410 = vcmp.eq.s32.totalorder %v373, %v387
        %vm411 = vcmp.eq.s32.totalorder %v374, %v387
        %vm412 = vcmp.eq.s32.totalorder %v375, %v387
        %vm413 = vcmp.eq.s32.totalorder %v376, %v387
        %vm414 = vcmp.eq.s32.totalorder %v377, %v387
        %vm415 = vcmp.eq.s32.totalorder %v378, %v387
        %vm416 = vcmp.eq.s32.totalorder %v379, %v387
        %vm417 = vcmp.eq.s32.totalorder %v380, %v387
        %vm418 = vcmp.eq.s32.totalorder %v381, %v387
        %vm419 = vcmp.eq.s32.totalorder %v382, %v387
        %v420 = vsel %vm388, 1, 0
        %v421 = vsel %vm389, 1, 0
        %v422 = vsel %vm390, 1, 0
        %v423 = vsel %vm391, 1, 0
        %v424 = vsel %vm392, 1, 0
        %v425 = vsel %vm393, 1, 0
        %v426 = vsel %vm394, 1, 0
        %v427 = vsel %vm395, 1, 0
        %v428 = vsel %vm396, 1, 0
        %v429 = vsel %vm397, 1, 0
        %v430 = vsel %vm398, 1, 0
        %v431 = vsel %vm399, 1, 0
        %v432 = vsel %vm400, 1, 0
        %v433 = vsel %vm401, 1, 0
        %v434 = vsel %vm402, 1, 0
        %v435 = vsel %vm403, 1, 0
        %v436 = vsel %vm404, 1, 0
        %v437 = vsel %vm405, 1, 0
        %v438 = vsel %vm406, 1, 0
        %v439 = vsel %vm407, 1, 0
        %v440 = vsel %vm408, 1, 0
        %v441 = vsel %vm409, 1, 0
        %v442 = vsel %vm410, 1, 0
        %v443 = vsel %vm411, 1, 0
        %v444 = vsel %vm412, 1, 0
        %v445 = vsel %vm413, 1, 0
        %v446 = vsel %vm414, 1, 0
        %v447 = vsel %vm415, 1, 0
        %v448 = vsel %vm416, 1, 0
        %v449 = vsel %vm417, 1, 0
        %v450 = vsel %vm418, 1, 0
        %v451 = vsel %vm419, 1, 0
        %v452 = vcvt.s32.f32 %v420
        %v453 = vcvt.s32.f32 %v421
        %v454 = vcvt.s32.f32 %v422
        %v455 = vcvt.s32.f32 %v423
        %v456 = vcvt.s32.f32 %v424
        %v457 = vcvt.s32.f32 %v425
        %v458 = vcvt.s32.f32 %v426
        %v459 = vcvt.s32.f32 %v427
        %v460 = vcvt.s32.f32 %v428
        %v461 = vcvt.s32.f32 %v429
        %v462 = vcvt.s32.f32 %v430
        %v463 = vcvt.s32.f32 %v431
        %v464 = vcvt.s32.f32 %v432
        %v465 = vcvt.s32.f32 %v433
        %v466 = vcvt.s32.f32 %v434
        %v467 = vcvt.s32.f32 %v435
        %v468 = vcvt.s32.f32 %v436
        %v469 = vcvt.s32.f32 %v437
        %v470 = vcvt.s32.f32 %v438
        %v471 = vcvt.s32.f32 %v439
        %v472 = vcvt.s32.f32 %v440
        %v473 = vcvt.s32.f32 %v441
        %v474 = vcvt.s32.f32 %v442
        %v475 = vcvt.s32.f32 %v443
        %v476 = vcvt.s32.f32 %v444
        %v477 = vcvt.s32.f32 %v445
        %v478 = vcvt.s32.f32 %v446
        %v479 = vcvt.s32.f32 %v447
        %v480 = vcvt.s32.f32 %v448
        %v481 = vcvt.s32.f32 %v449
        %v482 = vcvt.s32.f32 %v450
        %v483 = vcvt.s32.f32 %v451
        %v484 = vld [vmem:[#allocation2] sm:$0xf]
        %v485 = vld [vmem:[%s269] sm:$0xff]
        %v487 = vcombine.high %v485, %v485
        %489 = vmatprep.subr.mxu0 0.0
        %v490 = vand.u32 %v452, 4294901760
        %491 = vmatpush1.msra.mxu0 %v490
        %492 = vmatprep.subr.mxu0 0.0
        %v493 = vand.u32 %v453, 4294901760
        %494 = vmatpush1.msra.mxu0 %v493
        %495 = vmatprep.subr.mxu0 0.0
        %v496 = vand.u32 %v454, 4294901760
        %497 = vmatpush1.msra.mxu0 %v496
        %498 = vmatprep.subr.mxu0 0.0
        %v499 = vand.u32 %v455, 4294901760
        %500 = vmatpush1.msra.mxu0 %v499
        %501 = vmatprep.subr.mxu0 0.0
        %v502 = vand.u32 %v456, 4294901760
        %503 = vmatpush1.msra.mxu0 %v502
        %504 = vmatprep.subr.mxu0 0.0
        %v505 = vand.u32 %v457, 4294901760
        %506 = vmatpush1.msra.mxu0 %v505
        %507 = vmatprep.subr.mxu0 0.0
        %v508 = vand.u32 %v458, 4294901760
        %509 = vmatpush1.msra.mxu0 %v508
        %510 = vmatprep.subr.mxu0 0.0
        %v511 = vand.u32 %v459, 4294901760
        %512 = vmatpush1.msra.mxu0 %v511
        %513 = vmatprep.subr.mxu0 0.0
        %v514 = vand.u32 %v460, 4294901760
        %515 = vmatpush1.msra.mxu0 %v514
        %516 = vmatprep.subr.mxu0 0.0
        %v517 = vand.u32 %v461, 4294901760
        %518 = vmatpush1.msra.mxu0 %v517
        %519 = vmatprep.subr.mxu0 0.0
        %v520 = vand.u32 %v462, 4294901760
        %521 = vmatpush1.msra.mxu0 %v520
        %522 = vmatprep.subr.mxu0 0.0
        %v523 = vand.u32 %v463, 4294901760
        %524 = vmatpush1.msra.mxu0 %v523
        %525 = vmatprep.subr.mxu0 0.0
        %v526 = vand.u32 %v464, 4294901760
        %527 = vmatpush1.msra.mxu0 %v526
        %528 = vmatprep.subr.mxu0 0.0
        %v529 = vand.u32 %v465, 4294901760
        %530 = vmatpush1.msra.mxu0 %v529
        %531 = vmatprep.subr.mxu0 0.0
        %v532 = vand.u32 %v466, 4294901760
        %533 = vmatpush1.msra.mxu0 %v532
        %534 = vmatprep.subr.mxu0 0.0
        %v535 = vand.u32 %v467, 4294901760
        %536 = vmatpush1.msra.mxu0 %v535
        %537 = vmatprep.subr.mxu0 0.0
        %v538 = vand.u32 %v468, 4294901760
        %539 = vmatpush1.msra.mxu0 %v538
        %540 = vmatprep.subr.mxu0 0.0
        %v541 = vand.u32 %v469, 4294901760
        %542 = vmatpush1.msra.mxu0 %v541
        %543 = vmatprep.subr.mxu0 0.0
        %v544 = vand.u32 %v470, 4294901760
        %545 = vmatpush1.msra.mxu0 %v544
        %546 = vmatprep.subr.mxu0 0.0
        %v547 = vand.u32 %v471, 4294901760
        %548 = vmatpush1.msra.mxu0 %v547
        %549 = vmatprep.subr.mxu0 0.0
        %v550 = vand.u32 %v472, 4294901760
        %551 = vmatpush1.msra.mxu0 %v550
        %552 = vmatprep.subr.mxu0 0.0
        %v553 = vand.u32 %v473, 4294901760
        %554 = vmatpush1.msra.mxu0 %v553
        %555 = vmatprep.subr.mxu0 0.0
        %v556 = vand.u32 %v474, 4294901760
        %557 = vmatpush1.msra.mxu0 %v556
        %558 = vmatprep.subr.mxu0 0.0
        %v559 = vand.u32 %v475, 4294901760
        %560 = vmatpush1.msra.mxu0 %v559
        %561 = vmatprep.subr.mxu0 0.0
        %v562 = vand.u32 %v476, 4294901760
        %563 = vmatpush1.msra.mxu0 %v562
        %564 = vmatprep.subr.mxu0 0.0
        %v565 = vand.u32 %v477, 4294901760
        %566 = vmatpush1.msra.mxu0 %v565
        %567 = vmatprep.subr.mxu0 0.0
        %v568 = vand.u32 %v478, 4294901760
        %569 = vmatpush1.msra.mxu0 %v568
        %570 = vmatprep.subr.mxu0 0.0
        %v571 = vand.u32 %v479, 4294901760
        %572 = vmatpush1.msra.mxu0 %v571
        %573 = vmatprep.subr.mxu0 0.0
        %v574 = vand.u32 %v480, 4294901760
        %575 = vmatpush1.msra.mxu0 %v574
        %576 = vmatprep.subr.mxu0 0.0
        %v577 = vand.u32 %v481, 4294901760
        %578 = vmatpush1.msra.mxu0 %v577
        %579 = vmatprep.subr.mxu0 0.0
        %v580 = vand.u32 %v482, 4294901760
        %581 = vmatpush1.msra.mxu0 %v580
        %582 = vmatprep.subr.mxu0 0.0
        %v583 = vand.u32 %v483, 4294901760
        %584 = vmatpush1.msra.mxu0 %v583
        %v585 = vand.u32 %v487, 4294901760
        %v586 = vsub.f32 %v487, %v585
        %v587 = vand.u32 %v586, 4294901760
        %v588 = vsub.f32 %v586, %v587
        %v589 = vand.u32 %v588, 4294901760
        %590 = vmatprep.mubr.f32.mxu0 %v589
        %v591 = vand.u32 %v485, 4294901760
        %v592 = vsub.f32 %v485, %v591
        %v593 = vand.u32 %v592, 4294901760
        %v594 = vsub.f32 %v592, %v593
        %v595 = vand.u32 %v594, 4294901760
        %596 = vmatmul.mubr.f32.gmra.mrb[0].mxu0 %v595
        %v597 = vpop.f32.mrb[0].mxu0
        %v598 = vadd.f32 0.0, %v597
        %v599 = vpop.f32.mrb[0].mxu0
        %600 = vdwg.mxu0
        %601 = vmatprep.subr.mxu0 0.0
        %v602 = vand.u32 %v452, 4294901760
        %v603 = vsub.f32 %v452, %v602
        %v604 = vand.u32 %v603, 4294901760
        %v605 = vsub.f32 %v603, %v604
        %v606 = vand.u32 %v605, 4294901760
        %607 = vmatpush1.msra.mxu0 %v606
        %608 = vmatprep.subr.mxu0 0.0
        %v609 = vand.u32 %v453, 4294901760
        %v610 = vsub.f32 %v453, %v609
        %v611 = vand.u32 %v610, 4294901760
        %v612 = vsub.f32 %v610, %v611
        %v613 = vand.u32 %v612, 4294901760
        %614 = vmatpush1.msra.mxu0 %v613
        %615 = vmatprep.subr.mxu0 0.0
        %v616 = vand.u32 %v454, 4294901760
        %v617 = vsub.f32 %v454, %v616
        %v618 = vand.u32 %v617, 4294901760
        %v619 = vsub.f32 %v617, %v618
        %v620 = vand.u32 %v619, 4294901760
        %621 = vmatpush1.msra.mxu0 %v620
        %622 = vmatprep.subr.mxu0 0.0
        %v623 = vand.u32 %v455, 4294901760
        %v624 = vsub.f32 %v455, %v623
        %v625 = vand.u32 %v624, 4294901760
        %v626 = vsub.f32 %v624, %v625
        %v627 = vand.u32 %v626, 4294901760
        %628 = vmatpush1.msra.mxu0 %v627
        %629 = vmatprep.subr.mxu0 0.0
        %v630 = vand.u32 %v456, 4294901760
        %v631 = vsub.f32 %v456, %v630
        %v632 = vand.u32 %v631, 4294901760
        %v633 = vsub.f32 %v631, %v632
        %v634 = vand.u32 %v633, 4294901760
        %635 = vmatpush1.msra.mxu0 %v634
        %636 = vmatprep.subr.mxu0 0.0
        %v637 = vand.u32 %v457, 4294901760
        %v638 = vsub.f32 %v457, %v637
        %v639 = vand.u32 %v638, 4294901760
        %v640 = vsub.f32 %v638, %v639
        %v641 = vand.u32 %v640, 4294901760
        %642 = vmatpush1.msra.mxu0 %v641
        %643 = vmatprep.subr.mxu0 0.0
        %v644 = vand.u32 %v458, 4294901760
        %v645 = vsub.f32 %v458, %v644
        %v646 = vand.u32 %v645, 4294901760
        %v647 = vsub.f32 %v645, %v646
        %v648 = vand.u32 %v647, 4294901760
        %649 = vmatpush1.msra.mxu0 %v648
        %650 = vmatprep.subr.mxu0 0.0
        %v651 = vand.u32 %v459, 4294901760
        %v652 = vsub.f32 %v459, %v651
        %v653 = vand.u32 %v652, 4294901760
        %v654 = vsub.f32 %v652, %v653
        %v655 = vand.u32 %v654, 4294901760
        %656 = vmatpush1.msra.mxu0 %v655
        %657 = vmatprep.subr.mxu0 0.0
        %v658 = vand.u32 %v460, 4294901760
        %v659 = vsub.f32 %v460, %v658
        %v660 = vand.u32 %v659, 4294901760
        %v661 = vsub.f32 %v659, %v660
        %v662 = vand.u32 %v661, 4294901760
        %663 = vmatpush1.msra.mxu0 %v662
        %664 = vmatprep.subr.mxu0 0.0
        %v665 = vand.u32 %v461, 4294901760
        %v666 = vsub.f32 %v461, %v665
        %v667 = vand.u32 %v666, 4294901760
        %v668 = vsub.f32 %v666, %v667
        %v669 = vand.u32 %v668, 4294901760
        %670 = vmatpush1.msra.mxu0 %v669
        %671 = vmatprep.subr.mxu0 0.0
        %v672 = vand.u32 %v462, 4294901760
        %v673 = vsub.f32 %v462, %v672
        %v674 = vand.u32 %v673, 4294901760
        %v675 = vsub.f32 %v673, %v674
        %v676 = vand.u32 %v675, 4294901760
        %677 = vmatpush1.msra.mxu0 %v676
        %678 = vmatprep.subr.mxu0 0.0
        %v679 = vand.u32 %v463, 4294901760
        %v680 = vsub.f32 %v463, %v679
        %v681 = vand.u32 %v680, 4294901760
        %v682 = vsub.f32 %v680, %v681
        %v683 = vand.u32 %v682, 4294901760
        %684 = vmatpush1.msra.mxu0 %v683
        %685 = vmatprep.subr.mxu0 0.0
        %v686 = vand.u32 %v464, 4294901760
        %v687 = vsub.f32 %v464, %v686
        %v688 = vand.u32 %v687, 4294901760
        %v689 = vsub.f32 %v687, %v688
        %v690 = vand.u32 %v689, 4294901760
        %691 = vmatpush1.msra.mxu0 %v690
        %692 = vmatprep.subr.mxu0 0.0
        %v693 = vand.u32 %v465, 4294901760
        %v694 = vsub.f32 %v465, %v693
        %v695 = vand.u32 %v694, 4294901760
        %v696 = vsub.f32 %v694, %v695
        %v697 = vand.u32 %v696, 4294901760
        %698 = vmatpush1.msra.mxu0 %v697
        %699 = vmatprep.subr.mxu0 0.0
        %v700 = vand.u32 %v466, 4294901760
        %v701 = vsub.f32 %v466, %v700
        %v702 = vand.u32 %v701, 4294901760
        %v703 = vsub.f32 %v701, %v702
        %v704 = vand.u32 %v703, 4294901760
        %705 = vmatpush1.msra.mxu0 %v704
        %706 = vmatprep.subr.mxu0 0.0
        %v707 = vand.u32 %v467, 4294901760
        %v708 = vsub.f32 %v467, %v707
        %v709 = vand.u32 %v708, 4294901760
        %v710 = vsub.f32 %v708, %v709
        %v711 = vand.u32 %v710, 4294901760
        %712 = vmatpush1.msra.mxu0 %v711
        %713 = vmatprep.subr.mxu0 0.0
        %v714 = vand.u32 %v468, 4294901760
        %v715 = vsub.f32 %v468, %v714
        %v716 = vand.u32 %v715, 4294901760
        %v717 = vsub.f32 %v715, %v716
        %v718 = vand.u32 %v717, 4294901760
        %719 = vmatpush1.msra.mxu0 %v718
        %720 = vmatprep.subr.mxu0 0.0
        %v721 = vand.u32 %v469, 4294901760
        %v722 = vsub.f32 %v469, %v721
        %v723 = vand.u32 %v722, 4294901760
        %v724 = vsub.f32 %v722, %v723
        %v725 = vand.u32 %v724, 4294901760
        %726 = vmatpush1.msra.mxu0 %v725
        %727 = vmatprep.subr.mxu0 0.0
        %v728 = vand.u32 %v470, 4294901760
        %v729 = vsub.f32 %v470, %v728
        %v730 = vand.u32 %v729, 4294901760
        %v731 = vsub.f32 %v729, %v730
        %v732 = vand.u32 %v731, 4294901760
        %733 = vmatpush1.msra.mxu0 %v732
        %734 = vmatprep.subr.mxu0 0.0
        %v735 = vand.u32 %v471, 4294901760
        %v736 = vsub.f32 %v471, %v735
        %v737 = vand.u32 %v736, 4294901760
        %v738 = vsub.f32 %v736, %v737
        %v739 = vand.u32 %v738, 4294901760
        %740 = vmatpush1.msra.mxu0 %v739
        %741 = vmatprep.subr.mxu0 0.0
        %v742 = vand.u32 %v472, 4294901760
        %v743 = vsub.f32 %v472, %v742
        %v744 = vand.u32 %v743, 4294901760
        %v745 = vsub.f32 %v743, %v744
        %v746 = vand.u32 %v745, 4294901760
        %747 = vmatpush1.msra.mxu0 %v746
        %748 = vmatprep.subr.mxu0 0.0
        %v749 = vand.u32 %v473, 4294901760
        %v750 = vsub.f32 %v473, %v749
        %v751 = vand.u32 %v750, 4294901760
        %v752 = vsub.f32 %v750, %v751
        %v753 = vand.u32 %v752, 4294901760
        %754 = vmatpush1.msra.mxu0 %v753
        %755 = vmatprep.subr.mxu0 0.0
        %v756 = vand.u32 %v474, 4294901760
        %v757 = vsub.f32 %v474, %v756
        %v758 = vand.u32 %v757, 4294901760
        %v759 = vsub.f32 %v757, %v758
        %v760 = vand.u32 %v759, 4294901760
        %761 = vmatpush1.msra.mxu0 %v760
        %762 = vmatprep.subr.mxu0 0.0
        %v763 = vand.u32 %v475, 4294901760
        %v764 = vsub.f32 %v475, %v763
        %v765 = vand.u32 %v764, 4294901760
        %v766 = vsub.f32 %v764, %v765
        %v767 = vand.u32 %v766, 4294901760
        %768 = vmatpush1.msra.mxu0 %v767
        %769 = vmatprep.subr.mxu0 0.0
        %v770 = vand.u32 %v476, 4294901760
        %v771 = vsub.f32 %v476, %v770
        %v772 = vand.u32 %v771, 4294901760
        %v773 = vsub.f32 %v771, %v772
        %v774 = vand.u32 %v773, 4294901760
        %775 = vmatpush1.msra.mxu0 %v774
        %776 = vmatprep.subr.mxu0 0.0
        %v777 = vand.u32 %v477, 4294901760
        %v778 = vsub.f32 %v477, %v777
        %v779 = vand.u32 %v778, 4294901760
        %v780 = vsub.f32 %v778, %v779
        %v781 = vand.u32 %v780, 4294901760
        %782 = vmatpush1.msra.mxu0 %v781
        %783 = vmatprep.subr.mxu0 0.0
        %v784 = vand.u32 %v478, 4294901760
        %v785 = vsub.f32 %v478, %v784
        %v786 = vand.u32 %v785, 4294901760
        %v787 = vsub.f32 %v785, %v786
        %v788 = vand.u32 %v787, 4294901760
        %789 = vmatpush1.msra.mxu0 %v788
        %790 = vmatprep.subr.mxu0 0.0
        %v791 = vand.u32 %v479, 4294901760
        %v792 = vsub.f32 %v479, %v791
        %v793 = vand.u32 %v792, 4294901760
        %v794 = vsub.f32 %v792, %v793
        %v795 = vand.u32 %v794, 4294901760
        %796 = vmatpush1.msra.mxu0 %v795
        %797 = vmatprep.subr.mxu0 0.0
        %v798 = vand.u32 %v480, 4294901760
        %v799 = vsub.f32 %v480, %v798
        %v800 = vand.u32 %v799, 4294901760
        %v801 = vsub.f32 %v799, %v800
        %v802 = vand.u32 %v801, 4294901760
        %803 = vmatpush1.msra.mxu0 %v802
        %804 = vmatprep.subr.mxu0 0.0
        %v805 = vand.u32 %v481, 4294901760
        %v806 = vsub.f32 %v481, %v805
        %v807 = vand.u32 %v806, 4294901760
        %v808 = vsub.f32 %v806, %v807
        %v809 = vand.u32 %v808, 4294901760
        %810 = vmatpush1.msra.mxu0 %v809
        %811 = vmatprep.subr.mxu0 0.0
        %v812 = vand.u32 %v482, 4294901760
        %v813 = vsub.f32 %v482, %v812
        %v814 = vand.u32 %v813, 4294901760
        %v815 = vsub.f32 %v813, %v814
        %v816 = vand.u32 %v815, 4294901760
        %817 = vmatpush1.msra.mxu0 %v816
        %818 = vmatprep.subr.mxu0 0.0
        %v819 = vand.u32 %v483, 4294901760
        %v820 = vsub.f32 %v483, %v819
        %v821 = vand.u32 %v820, 4294901760
        %v822 = vsub.f32 %v820, %v821
        %v823 = vand.u32 %v822, 4294901760
        %824 = vmatpush1.msra.mxu0 %v823
        %v825 = vand.u32 %v487, 4294901760
        %826 = vmatprep.mubr.f32.mxu0 %v825
        %v827 = vand.u32 %v485, 4294901760
        %828 = vmatmul.mubr.f32.gmra.mrb[0].mxu0 %v827
        %v829 = vpop.f32.mrb[0].mxu0
        %v830 = vadd.f32 %v598, %v829
        %v831 = vpop.f32.mrb[0].mxu0
        %832 = vdwg.mxu0
        %833 = vmatprep.subr.mxu0 0.0
        %v834 = vand.u32 %v452, 4294901760
        %v835 = vsub.f32 %v452, %v834
        %836 = vmatpush1.msra.mxu0 %v835
        %837 = vmatprep.subr.mxu0 0.0
        %v838 = vand.u32 %v453, 4294901760
        %v839 = vsub.f32 %v453, %v838
        %840 = vmatpush1.msra.mxu0 %v839
        %841 = vmatprep.subr.mxu0 0.0
        %v842 = vand.u32 %v454, 4294901760
        %v843 = vsub.f32 %v454, %v842
        %844 = vmatpush1.msra.mxu0 %v843
        %845 = vmatprep.subr.mxu0 0.0
        %v846 = vand.u32 %v455, 4294901760
        %v847 = vsub.f32 %v455, %v846
        %848 = vmatpush1.msra.mxu0 %v847
        %849 = vmatprep.subr.mxu0 0.0
        %v850 = vand.u32 %v456, 4294901760
        %v851 = vsub.f32 %v456, %v850
        %852 = vmatpush1.msra.mxu0 %v851
        %853 = vmatprep.subr.mxu0 0.0
        %v854 = vand.u32 %v457, 4294901760
        %v855 = vsub.f32 %v457, %v854
        %856 = vmatpush1.msra.mxu0 %v855
        %857 = vmatprep.subr.mxu0 0.0
        %v858 = vand.u32 %v458, 4294901760
        %v859 = vsub.f32 %v458, %v858
        %860 = vmatpush1.msra.mxu0 %v859
        %861 = vmatprep.subr.mxu0 0.0
        %v862 = vand.u32 %v459, 4294901760
        %v863 = vsub.f32 %v459, %v862
        %864 = vmatpush1.msra.mxu0 %v863
        %865 = vmatprep.subr.mxu0 0.0
        %v866 = vand.u32 %v460, 4294901760
        %v867 = vsub.f32 %v460, %v866
        %868 = vmatpush1.msra.mxu0 %v867
        %869 = vmatprep.subr.mxu0 0.0
        %v870 = vand.u32 %v461, 4294901760
        %v871 = vsub.f32 %v461, %v870
        %872 = vmatpush1.msra.mxu0 %v871
        %873 = vmatprep.subr.mxu0 0.0
        %v874 = vand.u32 %v462, 4294901760
        %v875 = vsub.f32 %v462, %v874
        %876 = vmatpush1.msra.mxu0 %v875
        %877 = vmatprep.subr.mxu0 0.0
        %v878 = vand.u32 %v463, 4294901760
        %v879 = vsub.f32 %v463, %v878
        %880 = vmatpush1.msra.mxu0 %v879
        %881 = vmatprep.subr.mxu0 0.0
        %v882 = vand.u32 %v464, 4294901760
        %v883 = vsub.f32 %v464, %v882
        %884 = vmatpush1.msra.mxu0 %v883
        %885 = vmatprep.subr.mxu0 0.0
        %v886 = vand.u32 %v465, 4294901760
        %v887 = vsub.f32 %v465, %v886
        %888 = vmatpush1.msra.mxu0 %v887
        %889 = vmatprep.subr.mxu0 0.0
        %v890 = vand.u32 %v466, 4294901760
        %v891 = vsub.f32 %v466, %v890
        %892 = vmatpush1.msra.mxu0 %v891
        %893 = vmatprep.subr.mxu0 0.0
        %v894 = vand.u32 %v467, 4294901760
        %v895 = vsub.f32 %v467, %v894
        %896 = vmatpush1.msra.mxu0 %v895
        %897 = vmatprep.subr.mxu0 0.0
        %v898 = vand.u32 %v468, 4294901760
        %v899 = vsub.f32 %v468, %v898
        %900 = vmatpush1.msra.mxu0 %v899
        %901 = vmatprep.subr.mxu0 0.0
        %v902 = vand.u32 %v469, 4294901760
        %v903 = vsub.f32 %v469, %v902
        %904 = vmatpush1.msra.mxu0 %v903
        %905 = vmatprep.subr.mxu0 0.0
        %v906 = vand.u32 %v470, 4294901760
        %v907 = vsub.f32 %v470, %v906
        %908 = vmatpush1.msra.mxu0 %v907
        %909 = vmatprep.subr.mxu0 0.0
        %v910 = vand.u32 %v471, 4294901760
        %v911 = vsub.f32 %v471, %v910
        %912 = vmatpush1.msra.mxu0 %v911
        %913 = vmatprep.subr.mxu0 0.0
        %v914 = vand.u32 %v472, 4294901760
        %v915 = vsub.f32 %v472, %v914
        %916 = vmatpush1.msra.mxu0 %v915
        %917 = vmatprep.subr.mxu0 0.0
        %v918 = vand.u32 %v473, 4294901760
        %v919 = vsub.f32 %v473, %v918
        %920 = vmatpush1.msra.mxu0 %v919
        %921 = vmatprep.subr.mxu0 0.0
        %v922 = vand.u32 %v474, 4294901760
        %v923 = vsub.f32 %v474, %v922
        %924 = vmatpush1.msra.mxu0 %v923
        %925 = vmatprep.subr.mxu0 0.0
        %v926 = vand.u32 %v475, 4294901760
        %v927 = vsub.f32 %v475, %v926
        %928 = vmatpush1.msra.mxu0 %v927
        %929 = vmatprep.subr.mxu0 0.0
        %v930 = vand.u32 %v476, 4294901760
        %v931 = vsub.f32 %v476, %v930
        %932 = vmatpush1.msra.mxu0 %v931
        %933 = vmatprep.subr.mxu0 0.0
        %v934 = vand.u32 %v477, 4294901760
        %v935 = vsub.f32 %v477, %v934
        %936 = vmatpush1.msra.mxu0 %v935
        %937 = vmatprep.subr.mxu0 0.0
        %v938 = vand.u32 %v478, 4294901760
        %v939 = vsub.f32 %v478, %v938
        %940 = vmatpush1.msra.mxu0 %v939
        %941 = vmatprep.subr.mxu0 0.0
        %v942 = vand.u32 %v479, 4294901760
        %v943 = vsub.f32 %v479, %v942
        %944 = vmatpush1.msra.mxu0 %v943
        %945 = vmatprep.subr.mxu0 0.0
        %v946 = vand.u32 %v480, 4294901760
        %v947 = vsub.f32 %v480, %v946
        %948 = vmatpush1.msra.mxu0 %v947
        %949 = vmatprep.subr.mxu0 0.0
        %v950 = vand.u32 %v481, 4294901760
        %v951 = vsub.f32 %v481, %v950
        %952 = vmatpush1.msra.mxu0 %v951
        %953 = vmatprep.subr.mxu0 0.0
        %v954 = vand.u32 %v482, 4294901760
        %v955 = vsub.f32 %v482, %v954
        %956 = vmatpush1.msra.mxu0 %v955
        %957 = vmatprep.subr.mxu0 0.0
        %v958 = vand.u32 %v483, 4294901760
        %v959 = vsub.f32 %v483, %v958
        %960 = vmatpush1.msra.mxu0 %v959
        %v961 = vand.u32 %v487, 4294901760
        %v962 = vsub.f32 %v487, %v961
        %963 = vmatprep.mubr.f32.mxu0 %v962
        %v964 = vand.u32 %v485, 4294901760
        %v965 = vsub.f32 %v485, %v964
        %966 = vmatmul.mubr.f32.gmra.mrb[0].mxu0 %v965
        %v967 = vpop.f32.mrb[0].mxu0
        %v968 = vadd.f32 %v830, %v967
        %v969 = vpop.f32.mrb[0].mxu0
        %970 = vdwg.mxu0
        %971 = vmatprep.subr.mxu0 0.0
        %v972 = vand.u32 %v452, 4294901760
        %973 = vmatpush1.msra.mxu0 %v972
        %974 = vmatprep.subr.mxu0 0.0
        %v975 = vand.u32 %v453, 4294901760
        %976 = vmatpush1.msra.mxu0 %v975
        %977 = vmatprep.subr.mxu0 0.0
        %v978 = vand.u32 %v454, 4294901760
        %979 = vmatpush1.msra.mxu0 %v978
        %980 = vmatprep.subr.mxu0 0.0
        %v981 = vand.u32 %v455, 4294901760
        %982 = vmatpush1.msra.mxu0 %v981
        %983 = vmatprep.subr.mxu0 0.0
        %v984 = vand.u32 %v456, 4294901760
        %985 = vmatpush1.msra.mxu0 %v984
        %986 = vmatprep.subr.mxu0 0.0
        %v987 = vand.u32 %v457, 4294901760
        %988 = vmatpush1.msra.mxu0 %v987
        %989 = vmatprep.subr.mxu0 0.0
        %v990 = vand.u32 %v458, 4294901760
        %991 = vmatpush1.msra.mxu0 %v990
        %992 = vmatprep.subr.mxu0 0.0
        %v993 = vand.u32 %v459, 4294901760
        %994 = vmatpush1.msra.mxu0 %v993
        %995 = vmatprep.subr.mxu0 0.0
        %v996 = vand.u32 %v460, 4294901760
        %997 = vmatpush1.msra.mxu0 %v996
        %998 = vmatprep.subr.mxu0 0.0
        %v999 = vand.u32 %v461, 4294901760
        %1000 = vmatpush1.msra.mxu0 %v999
        %1001 = vmatprep.subr.mxu0 0.0
        %v1002 = vand.u32 %v462, 4294901760
        %1003 = vmatpush1.msra.mxu0 %v1002
        %1004 = vmatprep.subr.mxu0 0.0
        %v1005 = vand.u32 %v463, 4294901760
        %1006 = vmatpush1.msra.mxu0 %v1005
        %1007 = vmatprep.subr.mxu0 0.0
        %v1008 = vand.u32 %v464, 4294901760
        %1009 = vmatpush1.msra.mxu0 %v1008
        %1010 = vmatprep.subr.mxu0 0.0
        %v1011 = vand.u32 %v465, 4294901760
        %1012 = vmatpush1.msra.mxu0 %v1011
        %1013 = vmatprep.subr.mxu0 0.0
        %v1014 = vand.u32 %v466, 4294901760
        %1015 = vmatpush1.msra.mxu0 %v1014
        %1016 = vmatprep.subr.mxu0 0.0
        %v1017 = vand.u32 %v467, 4294901760
        %1018 = vmatpush1.msra.mxu0 %v1017
        %1019 = vmatprep.subr.mxu0 0.0
        %v1020 = vand.u32 %v468, 4294901760
        %1021 = vmatpush1.msra.mxu0 %v1020
        %1022 = vmatprep.subr.mxu0 0.0
        %v1023 = vand.u32 %v469, 4294901760
        %1024 = vmatpush1.msra.mxu0 %v1023
        %1025 = vmatprep.subr.mxu0 0.0
        %v1026 = vand.u32 %v470, 4294901760
        %1027 = vmatpush1.msra.mxu0 %v1026
        %1028 = vmatprep.subr.mxu0 0.0
        %v1029 = vand.u32 %v471, 4294901760
        %1030 = vmatpush1.msra.mxu0 %v1029
        %1031 = vmatprep.subr.mxu0 0.0
        %v1032 = vand.u32 %v472, 4294901760
        %1033 = vmatpush1.msra.mxu0 %v1032
        %1034 = vmatprep.subr.mxu0 0.0
        %v1035 = vand.u32 %v473, 4294901760
        %1036 = vmatpush1.msra.mxu0 %v1035
        %1037 = vmatprep.subr.mxu0 0.0
        %v1038 = vand.u32 %v474, 4294901760
        %1039 = vmatpush1.msra.mxu0 %v1038
        %1040 = vmatprep.subr.mxu0 0.0
        %v1041 = vand.u32 %v475, 4294901760
        %1042 = vmatpush1.msra.mxu0 %v1041
        %1043 = vmatprep.subr.mxu0 0.0
        %v1044 = vand.u32 %v476, 4294901760
        %1045 = vmatpush1.msra.mxu0 %v1044
        %1046 = vmatprep.subr.mxu0 0.0
        %v1047 = vand.u32 %v477, 4294901760
        %1048 = vmatpush1.msra.mxu0 %v1047
        %1049 = vmatprep.subr.mxu0 0.0
        %v1050 = vand.u32 %v478, 4294901760
        %1051 = vmatpush1.msra.mxu0 %v1050
        %1052 = vmatprep.subr.mxu0 0.0
        %v1053 = vand.u32 %v479, 4294901760
        %1054 = vmatpush1.msra.mxu0 %v1053
        %1055 = vmatprep.subr.mxu0 0.0
        %v1056 = vand.u32 %v480, 4294901760
        %1057 = vmatpush1.msra.mxu0 %v1056
        %1058 = vmatprep.subr.mxu0 0.0
        %v1059 = vand.u32 %v481, 4294901760
        %1060 = vmatpush1.msra.mxu0 %v1059
        %1061 = vmatprep.subr.mxu0 0.0
        %v1062 = vand.u32 %v482, 4294901760
        %1063 = vmatpush1.msra.mxu0 %v1062
        %1064 = vmatprep.subr.mxu0 0.0
        %v1065 = vand.u32 %v483, 4294901760
        %1066 = vmatpush1.msra.mxu0 %v1065
        %v1067 = vand.u32 %v487, 4294901760
        %v1068 = vsub.f32 %v487, %v1067
        %v1069 = vand.u32 %v1068, 4294901760
        %1070 = vmatprep.mubr.f32.mxu0 %v1069
        %v1071 = vand.u32 %v485, 4294901760
        %v1072 = vsub.f32 %v485, %v1071
        %v1073 = vand.u32 %v1072, 4294901760
        %1074 = vmatmul.mubr.f32.gmra.mrb[0].mxu0 %v1073
        %v1075 = vpop.f32.mrb[0].mxu0
        %v1076 = vadd.f32 %v968, %v1075
        %v1077 = vpop.f32.mrb[0].mxu0
        %1078 = vdwg.mxu0
        %1079 = vmatprep.subr.mxu0 0.0
        %v1080 = vand.u32 %v452, 4294901760
        %v1081 = vsub.f32 %v452, %v1080
        %v1082 = vand.u32 %v1081, 4294901760
        %1083 = vmatpush1.msra.mxu0 %v1082
        %1084 = vmatprep.subr.mxu0 0.0
        %v1085 = vand.u32 %v453, 4294901760
        %v1086 = vsub.f32 %v453, %v1085
        %v1087 = vand.u32 %v1086, 4294901760
        %1088 = vmatpush1.msra.mxu0 %v1087
        %1089 = vmatprep.subr.mxu0 0.0
        %v1090 = vand.u32 %v454, 4294901760
        %v1091 = vsub.f32 %v454, %v1090
        %v1092 = vand.u32 %v1091, 4294901760
        %1093 = vmatpush1.msra.mxu0 %v1092
        %1094 = vmatprep.subr.mxu0 0.0
        %v1095 = vand.u32 %v455, 4294901760
        %v1096 = vsub.f32 %v455, %v1095
        %v1097 = vand.u32 %v1096, 4294901760
        %1098 = vmatpush1.msra.mxu0 %v1097
        %1099 = vmatprep.subr.mxu0 0.0
        %v1100 = vand.u32 %v456, 4294901760
        %v1101 = vsub.f32 %v456, %v1100
        %v1102 = vand.u32 %v1101, 4294901760
        %1103 = vmatpush1.msra.mxu0 %v1102
        %1104 = vmatprep.subr.mxu0 0.0
        %v1105 = vand.u32 %v457, 4294901760
        %v1106 = vsub.f32 %v457, %v1105
        %v1107 = vand.u32 %v1106, 4294901760
        %1108 = vmatpush1.msra.mxu0 %v1107
        %1109 = vmatprep.subr.mxu0 0.0
        %v1110 = vand.u32 %v458, 4294901760
        %v1111 = vsub.f32 %v458, %v1110
        %v1112 = vand.u32 %v1111, 4294901760
        %1113 = vmatpush1.msra.mxu0 %v1112
        %1114 = vmatprep.subr.mxu0 0.0
        %v1115 = vand.u32 %v459, 4294901760
        %v1116 = vsub.f32 %v459, %v1115
        %v1117 = vand.u32 %v1116, 4294901760
        %1118 = vmatpush1.msra.mxu0 %v1117
        %1119 = vmatprep.subr.mxu0 0.0
        %v1120 = vand.u32 %v460, 4294901760
        %v1121 = vsub.f32 %v460, %v1120
        %v1122 = vand.u32 %v1121, 4294901760
        %1123 = vmatpush1.msra.mxu0 %v1122
        %1124 = vmatprep.subr.mxu0 0.0
        %v1125 = vand.u32 %v461, 4294901760
        %v1126 = vsub.f32 %v461, %v1125
        %v1127 = vand.u32 %v1126, 4294901760
        %1128 = vmatpush1.msra.mxu0 %v1127
        %1129 = vmatprep.subr.mxu0 0.0
        %v1130 = vand.u32 %v462, 4294901760
        %v1131 = vsub.f32 %v462, %v1130
        %v1132 = vand.u32 %v1131, 4294901760
        %1133 = vmatpush1.msra.mxu0 %v1132
        %1134 = vmatprep.subr.mxu0 0.0
        %v1135 = vand.u32 %v463, 4294901760
        %v1136 = vsub.f32 %v463, %v1135
        %v1137 = vand.u32 %v1136, 4294901760
        %1138 = vmatpush1.msra.mxu0 %v1137
        %1139 = vmatprep.subr.mxu0 0.0
        %v1140 = vand.u32 %v464, 4294901760
        %v1141 = vsub.f32 %v464, %v1140
        %v1142 = vand.u32 %v1141, 4294901760
        %1143 = vmatpush1.msra.mxu0 %v1142
        %1144 = vmatprep.subr.mxu0 0.0
        %v1145 = vand.u32 %v465, 4294901760
        %v1146 = vsub.f32 %v465, %v1145
        %v1147 = vand.u32 %v1146, 4294901760
        %1148 = vmatpush1.msra.mxu0 %v1147
        %1149 = vmatprep.subr.mxu0 0.0
        %v1150 = vand.u32 %v466, 4294901760
        %v1151 = vsub.f32 %v466, %v1150
        %v1152 = vand.u32 %v1151, 4294901760
        %1153 = vmatpush1.msra.mxu0 %v1152
        %1154 = vmatprep.subr.mxu0 0.0
        %v1155 = vand.u32 %v467, 4294901760
        %v1156 = vsub.f32 %v467, %v1155
        %v1157 = vand.u32 %v1156, 4294901760
        %1158 = vmatpush1.msra.mxu0 %v1157
        %1159 = vmatprep.subr.mxu0 0.0
        %v1160 = vand.u32 %v468, 4294901760
        %v1161 = vsub.f32 %v468, %v1160
        %v1162 = vand.u32 %v1161, 4294901760
        %1163 = vmatpush1.msra.mxu0 %v1162
        %1164 = vmatprep.subr.mxu0 0.0
        %v1165 = vand.u32 %v469, 4294901760
        %v1166 = vsub.f32 %v469, %v1165
        %v1167 = vand.u32 %v1166, 4294901760
        %1168 = vmatpush1.msra.mxu0 %v1167
        %1169 = vmatprep.subr.mxu0 0.0
        %v1170 = vand.u32 %v470, 4294901760
        %v1171 = vsub.f32 %v470, %v1170
        %v1172 = vand.u32 %v1171, 4294901760
        %1173 = vmatpush1.msra.mxu0 %v1172
        %1174 = vmatprep.subr.mxu0 0.0
        %v1175 = vand.u32 %v471, 4294901760
        %v1176 = vsub.f32 %v471, %v1175
        %v1177 = vand.u32 %v1176, 4294901760
        %1178 = vmatpush1.msra.mxu0 %v1177
        %1179 = vmatprep.subr.mxu0 0.0
        %v1180 = vand.u32 %v472, 4294901760
        %v1181 = vsub.f32 %v472, %v1180
        %v1182 = vand.u32 %v1181, 4294901760
        %1183 = vmatpush1.msra.mxu0 %v1182
        %1184 = vmatprep.subr.mxu0 0.0
        %v1185 = vand.u32 %v473, 4294901760
        %v1186 = vsub.f32 %v473, %v1185
        %v1187 = vand.u32 %v1186, 4294901760
        %1188 = vmatpush1.msra.mxu0 %v1187
        %1189 = vmatprep.subr.mxu0 0.0
        %v1190 = vand.u32 %v474, 4294901760
        %v1191 = vsub.f32 %v474, %v1190
        %v1192 = vand.u32 %v1191, 4294901760
        %1193 = vmatpush1.msra.mxu0 %v1192
        %1194 = vmatprep.subr.mxu0 0.0
        %v1195 = vand.u32 %v475, 4294901760
        %v1196 = vsub.f32 %v475, %v1195
        %v1197 = vand.u32 %v1196, 4294901760
        %1198 = vmatpush1.msra.mxu0 %v1197
        %1199 = vmatprep.subr.mxu0 0.0
        %v1200 = vand.u32 %v476, 4294901760
        %v1201 = vsub.f32 %v476, %v1200
        %v1202 = vand.u32 %v1201, 4294901760
        %1203 = vmatpush1.msra.mxu0 %v1202
        %1204 = vmatprep.subr.mxu0 0.0
        %v1205 = vand.u32 %v477, 4294901760
        %v1206 = vsub.f32 %v477, %v1205
        %v1207 = vand.u32 %v1206, 4294901760
        %1208 = vmatpush1.msra.mxu0 %v1207
        %1209 = vmatprep.subr.mxu0 0.0
        %v1210 = vand.u32 %v478, 4294901760
        %v1211 = vsub.f32 %v478, %v1210
        %v1212 = vand.u32 %v1211, 4294901760
        %1213 = vmatpush1.msra.mxu0 %v1212
        %1214 = vmatprep.subr.mxu0 0.0
        %v1215 = vand.u32 %v479, 4294901760
        %v1216 = vsub.f32 %v479, %v1215
        %v1217 = vand.u32 %v1216, 4294901760
        %1218 = vmatpush1.msra.mxu0 %v1217
        %1219 = vmatprep.subr.mxu0 0.0
        %v1220 = vand.u32 %v480, 4294901760
        %v1221 = vsub.f32 %v480, %v1220
        %v1222 = vand.u32 %v1221, 4294901760
        %1223 = vmatpush1.msra.mxu0 %v1222
        %1224 = vmatprep.subr.mxu0 0.0
        %v1225 = vand.u32 %v481, 4294901760
        %v1226 = vsub.f32 %v481, %v1225
        %v1227 = vand.u32 %v1226, 4294901760
        %1228 = vmatpush1.msra.mxu0 %v1227
        %1229 = vmatprep.subr.mxu0 0.0
        %v1230 = vand.u32 %v482, 4294901760
        %v1231 = vsub.f32 %v482, %v1230
        %v1232 = vand.u32 %v1231, 4294901760
        %1233 = vmatpush1.msra.mxu0 %v1232
        %1234 = vmatprep.subr.mxu0 0.0
        %v1235 = vand.u32 %v483, 4294901760
        %v1236 = vsub.f32 %v483, %v1235
        %v1237 = vand.u32 %v1236, 4294901760
        %1238 = vmatpush1.msra.mxu0 %v1237
        %v1239 = vand.u32 %v487, 4294901760
        %1240 = vmatprep.mubr.f32.mxu0 %v1239
        %v1241 = vand.u32 %v485, 4294901760
        %1242 = vmatmul.mubr.f32.gmra.mrb[0].mxu0 %v1241
        %v1243 = vpop.f32.mrb[0].mxu0
        %v1244 = vadd.f32 %v1076, %v1243
        %v1245 = vpop.f32.mrb[0].mxu0
        %1246 = vdwg.mxu0
        %1247 = vmatprep.subr.mxu0 0.0
        %v1248 = vand.u32 %v452, 4294901760
        %1249 = vmatpush1.msra.mxu0 %v1248
        %1250 = vmatprep.subr.mxu0 0.0
        %v1251 = vand.u32 %v453, 4294901760
        %1252 = vmatpush1.msra.mxu0 %v1251
        %1253 = vmatprep.subr.mxu0 0.0
        %v1254 = vand.u32 %v454, 4294901760
        %1255 = vmatpush1.msra.mxu0 %v1254
        %1256 = vmatprep.subr.mxu0 0.0
        %v1257 = vand.u32 %v455, 4294901760
        %1258 = vmatpush1.msra.mxu0 %v1257
        %1259 = vmatprep.subr.mxu0 0.0
        %v1260 = vand.u32 %v456, 4294901760
        %1261 = vmatpush1.msra.mxu0 %v1260
        %1262 = vmatprep.subr.mxu0 0.0
        %v1263 = vand.u32 %v457, 4294901760
        %1264 = vmatpush1.msra.mxu0 %v1263
        %1265 = vmatprep.subr.mxu0 0.0
        %v1266 = vand.u32 %v458, 4294901760
        %1267 = vmatpush1.msra.mxu0 %v1266
        %1268 = vmatprep.subr.mxu0 0.0
        %v1269 = vand.u32 %v459, 4294901760
        %1270 = vmatpush1.msra.mxu0 %v1269
        %1271 = vmatprep.subr.mxu0 0.0
        %v1272 = vand.u32 %v460, 4294901760
        %1273 = vmatpush1.msra.mxu0 %v1272
        %1274 = vmatprep.subr.mxu0 0.0
        %v1275 = vand.u32 %v461, 4294901760
        %1276 = vmatpush1.msra.mxu0 %v1275
        %1277 = vmatprep.subr.mxu0 0.0
        %v1278 = vand.u32 %v462, 4294901760
        %1279 = vmatpush1.msra.mxu0 %v1278
        %1280 = vmatprep.subr.mxu0 0.0
        %v1281 = vand.u32 %v463, 4294901760
        %1282 = vmatpush1.msra.mxu0 %v1281
        %1283 = vmatprep.subr.mxu0 0.0
        %v1284 = vand.u32 %v464, 4294901760
        %1285 = vmatpush1.msra.mxu0 %v1284
        %1286 = vmatprep.subr.mxu0 0.0
        %v1287 = vand.u32 %v465, 4294901760
        %1288 = vmatpush1.msra.mxu0 %v1287
        %1289 = vmatprep.subr.mxu0 0.0
        %v1290 = vand.u32 %v466, 4294901760
        %1291 = vmatpush1.msra.mxu0 %v1290
        %1292 = vmatprep.subr.mxu0 0.0
        %v1293 = vand.u32 %v467, 4294901760
        %1294 = vmatpush1.msra.mxu0 %v1293
        %1295 = vmatprep.subr.mxu0 0.0
        %v1296 = vand.u32 %v468, 4294901760
        %1297 = vmatpush1.msra.mxu0 %v1296
        %1298 = vmatprep.subr.mxu0 0.0
        %v1299 = vand.u32 %v469, 4294901760
        %1300 = vmatpush1.msra.mxu0 %v1299
        %1301 = vmatprep.subr.mxu0 0.0
        %v1302 = vand.u32 %v470, 4294901760
        %1303 = vmatpush1.msra.mxu0 %v1302
        %1304 = vmatprep.subr.mxu0 0.0
        %v1305 = vand.u32 %v471, 4294901760
        %1306 = vmatpush1.msra.mxu0 %v1305
        %1307 = vmatprep.subr.mxu0 0.0
        %v1308 = vand.u32 %v472, 4294901760
        %1309 = vmatpush1.msra.mxu0 %v1308
        %1310 = vmatprep.subr.mxu0 0.0
        %v1311 = vand.u32 %v473, 4294901760
        %1312 = vmatpush1.msra.mxu0 %v1311
        %1313 = vmatprep.subr.mxu0 0.0
        %v1314 = vand.u32 %v474, 4294901760
        %1315 = vmatpush1.msra.mxu0 %v1314
        %1316 = vmatprep.subr.mxu0 0.0
        %v1317 = vand.u32 %v475, 4294901760
        %1318 = vmatpush1.msra.mxu0 %v1317
        %1319 = vmatprep.subr.mxu0 0.0
        %v1320 = vand.u32 %v476, 4294901760
        %1321 = vmatpush1.msra.mxu0 %v1320
        %1322 = vmatprep.subr.mxu0 0.0
        %v1323 = vand.u32 %v477, 4294901760
        %1324 = vmatpush1.msra.mxu0 %v1323
        %1325 = vmatprep.subr.mxu0 0.0
        %v1326 = vand.u32 %v478, 4294901760
        %1327 = vmatpush1.msra.mxu0 %v1326
        %1328 = vmatprep.subr.mxu0 0.0
        %v1329 = vand.u32 %v479, 4294901760
        %1330 = vmatpush1.msra.mxu0 %v1329
        %1331 = vmatprep.subr.mxu0 0.0
        %v1332 = vand.u32 %v480, 4294901760
        %1333 = vmatpush1.msra.mxu0 %v1332
        %1334 = vmatprep.subr.mxu0 0.0
        %v1335 = vand.u32 %v481, 4294901760
        %1336 = vmatpush1.msra.mxu0 %v1335
        %1337 = vmatprep.subr.mxu0 0.0
        %v1338 = vand.u32 %v482, 4294901760
        %1339 = vmatpush1.msra.mxu0 %v1338
        %1340 = vmatprep.subr.mxu0 0.0
        %v1341 = vand.u32 %v483, 4294901760
        %1342 = vmatpush1.msra.mxu0 %v1341
        %v1343 = vand.u32 %v487, 4294901760
        %1344 = vmatprep.mubr.f32.mxu0 %v1343
        %v1345 = vand.u32 %v485, 4294901760
        %1346 = vmatmul.mubr.f32.gmra.mrb[0].mxu0 %v1345
        %v1347 = vpop.f32.mrb[0].mxu0
        %v1348 = vadd.f32 %v1244, %v1347
        %v1349 = vpop.f32.mrb[0].mxu0
        %1350 = vdwg.mxu0
        %v1351 = vadd.f32 %v484, %v1348
        %1352 = vst [vmem:[#allocation2] sm:$0xf] %v1351
        // Predicated region
        $region53: #{tpu_custom_call.1} parent=35 // pred_check
          %p1353 = pneg %p311
        $region54: #{tpu_custom_call.1} parent=35 // pred_check_branch
          %1355 = sbr.rel (%p1353) target = $region56
        $region55: #{tpu_custom_call.1} parent=35 // pred_region
          %v1356 = vld [vmem:[#allocation2] sm:$0xf]
          %v1357 = vld [vmem:[%s306] sm:$0x1]
          %v1358 = vld [vmem:[%s260] sm:$0xf]
          %v1359 = vsub.f32 %v1356, %v1358
          %v1360 = vand.u32 2147483647, %v1359
          %v1362 = vlaneseq
          %v1363 = vshrl.u32 %v1362, 7
          %v1364 = vsub.s32 0, %v1363
          %v1365 = vrot.slane %v1357, %v1364
          %v1367 = vmul.f32 %v1365, %v1360
          %vm1368 = vcmask 1043456
          %v1369 = vsel %vm1368, %v1367, 0.0
          %1370 = vadd.xlane.f32.xlu0 %v1369
          %v1371 = vpop.xlane.xlu0 %1370
          %v1372 = vrot.slane %v1371, 4
          %v1373 = vadd.f32 %v1371, %v1372
          %v1374 = vrot.slane %v1373, 2
          %v1375 = vadd.f32 %v1373, %v1374
          %v1376 = vrot.slane %v1375, 1
          %v1377 = vadd.f32 %v1375, %v1376
          %s1378 = vtos %v1377
          %v1379 = vstv %s1378
          %vm1380 = vcmask 0
          %1381 = vst.msk [vmem:[%s310] sm:$0x1] %vm1380, %v1379
        $region56: #{tpu_custom_call.1} parent=35 // pred_fallthru
          _
        %p1382 = scmp.lt.s32.totalorder %s25, 1
        %s1383 = scalar_select %p1382, %s25, 1
        %s1384 = scalar_lea.vmem %s4, %s1383
        // Predicated region
        $region57: #{tpu_custom_call.1} parent=35 // pred_check
          %p1385 = pneg %p157
        $region58: #{tpu_custom_call.1} parent=35 // pred_check_branch
          %1387 = sbr.rel (%p1385) target = $region60
        $region59: #{tpu_custom_call.1} parent=35 // pred_region
          _
        $region60: #{tpu_custom_call.1} parent=35 // pred_fallthru
          _
      $region36: #{tpu_custom_call.1} parent=5 // pred_fallthru
        _
      %p1388 = scmp.le.s32.totalorder 2, %s16
      // Predicated region
      $region61: #{tpu_custom_call.1} parent=5 // pred_check
        %p1389 = pneg %p1388
      $region62: #{tpu_custom_call.1} parent=5 // pred_check_branch
        %1391 = sbr.rel (%p1389) target = $region64
      $region63: #{tpu_custom_call.1} parent=5 // pred_region
        %s1392 = ssub.s32 %s16, 2
        // Predicated region
        $region65: #{tpu_custom_call.1} parent=63 // pred_check
          %p1393 = pneg %p163
        $region66: #{tpu_custom_call.1} parent=63 // pred_check_branch
          %1395 = sbr.rel (%p1393) target = $region68
        $region67: #{tpu_custom_call.1} parent=63 // pred_region
          %p1396 = scmp.lt.s32.totalorder %s27, 1
          %s1397 = scalar_select %p1396, %s27, 1
          %s1398 = scalar_lea.vmem %s4, %s1397
        $region68: #{tpu_custom_call.1} parent=63 // pred_fallthru
          _
      $region64: #{tpu_custom_call.1} parent=5 // pred_fallthru
        _
    $region6: #{tpu_custom_call.1} parent=1 // loop_footer
      %s20 = sadd.s32 1, %s16
    $region7: #{tpu_custom_call.1} parent=1 // loop_footer_branch
      %15 = sbr.rel target = $region3
    $region8: #{tpu_custom_call.1} parent=1 // loop_exit
      _
    %1399 = vsyncpa [#allocation4], 1
    %s1400 = scalar_lea.sflag [#allocation4], 1
    %1401 = vsyncpa %s1400, 1
    %1402 = vsyncpa [#allocation6], 1
    %s1403 = scalar_lea.sflag [#allocation6], 1
    %1404 = vsyncpa %s1403, 1

</llo_original>
